<compile_context>
chip_gen: v7x
topology: tpu7x:2x2x1
jax: 0.10.0
libtpu: 0.0.40
codegen_flags: <defaults>
</compile_context>

<pallas_src>
import functools

import jax
import jax.numpy as jnp
from jax.experimental import pallas as pl
from jax.experimental.pallas import tpu as pltpu


def _round_up(n, m):
    return ((n + m - 1) // m) * m


def _pcnn_kernel(x_ref, w_ref, b_ref, mask_ref, out_ref, acc_ref, *, kh, lt, n_b, n_p):
    # x_ref:    (B_tile, H_pad, W)       input rows (single channel), mm_dtype
    # w_ref:    (kh, W, Cp)              conv weight, one (W, Cp) slab per kernel row
    # b_ref:    (1, Cp)                  bias (zero-padded to Cp), f32
    # mask_ref: (1, Lt, B_tile*P)        piece mask, (b, p) folded onto the lane axis
    # out_ref:  (B_tile, P, Cp)          pooled output (lane-dense Cp)
    # acc_ref:  (B_tile*Lt, Cp) f32      conv accumulator scratch
    w_in = x_ref.shape[2]

    # ---- Conv as kh shifted matmuls with a large M = B_tile*Lt (amortizes MXU
    #      push/drain across the whole batch tile), chained f32 accumulation. ----
    for d in range(kh):
        xs = x_ref[:, d:d + lt, :].reshape(n_b * lt, w_in)          # free reshape (lt % 8 == 0)
        mm = jnp.dot(xs, w_ref[d], preferred_element_type=jnp.float32)
        if d == 0:
            acc_ref[...] = mm
        else:
            acc_ref[...] = acc_ref[...] + mm

    bias = b_ref[...]                                               # (1, Cp), loaded once per step

    # ---- Piecewise max-pool. Bias is added AFTER the max (Lt x fewer VPU adds);
    #      the P pooled rows are stored with one (P, Cp) store per batch element. ----
    for b in range(n_b):
        cnn_b = acc_ref[b * lt:(b + 1) * lt, :]                     # (Lt, Cp)
        rows = []
        for p in range(n_p):
            j = b * n_p + p
            col = mask_ref[0, :, j:j + 1]                           # (Lt, 1) lane column
            rows.append(jnp.max(cnn_b + col, axis=0, keepdims=True))  # (1, Cp)
        out_ref[b] = jnp.concatenate(rows, axis=0) + bias           # (P, Cp) coalesced store


def cnn_with_pool(x, mask, weight, bias, *, use_bf16_matmul=False,
                  vmem_budget_bytes=20 * 1024 * 1024):
    """Pallas implementation of CNNwithPool.forward.

    x:      (B, 1, H, W) float32   -- NCHW, single input channel
    mask:   (P, B, L)    float32   -- piece masks (0 inside piece, large negative outside)
    weight: (C, 1, kh, kw) float32 -- kw must equal W
    bias:   (C,)         float32
    returns (B, P, C)    float32
    """
    B, cin, H, W = x.shape
    assert cin == 1, "PCNN conv expects a single input channel"
    C, _, kh, kw = weight.shape
    assert kw == W, "PCNN conv kernel width must equal embedding width"
    Lp = H - kh + 1
    P = mask.shape[0]
    assert mask.shape[1] == B and mask.shape[2] >= Lp

    # ---- alignment padding: lanes -> 128, sublanes -> 8 ----
    Cp = _round_up(C, 128)                    # lane-dense channel dim
    Lt = _round_up(Lp, 8)                     # sublane-aligned time dim
    H_pad = _round_up(Lt + kh - 1, 8)         # shifted slices stay in-bounds

    mm_dtype = jnp.bfloat16 if use_bf16_matmul else jnp.float32
    mm_bytes = 2 if use_bf16_matmul else 4

    # ---- choose the batch tile from a VMEM byte budget (v7x has only 64 MiB) ----
    def _vmem_estimate(bt):
        x_t = bt * H_pad * W * mm_bytes                      # input tile
        w_t = kh * W * Cp * mm_bytes                         # weight (resident)
        m_t = Lt * max(128, bt * P) * 4                      # mask tile (lane-padded)
        o_t = bt * max(8, P) * Cp * 4                        # output tile (sublane-padded)
        bias_t = 8 * Cp * 4
        acc = bt * Lt * Cp * 4                               # f32 accumulator scratch
        return 2 * (x_t + w_t + m_t + o_t + bias_t) + acc    # x2: double buffering

    b_tile = min(8, max(1, B // 2))           # keep >= 2 grid steps when B >= 2 (v7x dual-TC)
    while b_tile > 1 and _vmem_estimate(b_tile) > vmem_budget_bytes:
        b_tile = max(1, b_tile // 2)
    B_pad = _round_up(B, b_tile)
    nbt = B_pad // b_tile
    vmem_limit = int(min(max(2 * _vmem_estimate(b_tile), 32 << 20), 48 << 20))

    # ---- host-side layout prep ----
    # Input: drop channel dim, pad B and H with zeros. (B_pad, H_pad, W)
    x2 = jnp.pad(x[:, 0].astype(mm_dtype),
                 ((0, B_pad - B), (0, H_pad - H), (0, 0)))

    # Weight (C, 1, kh, W) -> (kh, W, Cp): one (W, Cp) slab per kernel row.
    w3 = jnp.transpose(weight[:, 0], (1, 2, 0)).astype(mm_dtype)     # (kh, W, C)
    w3 = jnp.pad(w3, ((0, 0), (0, 0), (0, Cp - C)))

    # Bias -> (1, Cp), zero padded.
    b2 = jnp.pad(bias.reshape(1, C).astype(jnp.float32), ((0, 0), (0, Cp - C)))

    # Mask (P, B, L) -> lane-folded (nbt, Lt, B_tile*P); padded timesteps (and padded
    # batch rows) get -1e9 so they can never win the max.  mask_f[i, t, b*P + p]
    # == mask[p, i*B_tile + b, t].
    m_t = jnp.transpose(mask[:, :, :Lp], (1, 0, 2)).astype(jnp.float32)   # (B, P, Lp)
    m_t = jnp.pad(m_t, ((0, B_pad - B), (0, 0), (0, Lt - Lp)),
                  constant_values=-1e9)                                   # (B_pad, P, Lt)
    m_f = (m_t.reshape(nbt, b_tile, P, Lt)
              .transpose(0, 3, 1, 2)
              .reshape(nbt, Lt, b_tile * P))

    kernel = functools.partial(_pcnn_kernel, kh=kh, lt=Lt, n_b=b_tile, n_p=P)

    out = pl.pallas_call(
        kernel,
        out_shape=jax.ShapeDtypeStruct((B_pad, P, Cp), jnp.float32),
        grid_spec=pltpu.PrefetchScalarGridSpec(
            num_scalar_prefetch=0,
            grid=(nbt,),                                               # pipelined batch tiles
            in_specs=[
                pl.BlockSpec((b_tile, H_pad, W), lambda i: (i, 0, 0)),   # x rows
                pl.BlockSpec((kh, W, Cp), lambda i: (0, 0, 0)),          # weight (resident)
                pl.BlockSpec((1, Cp), lambda i: (0, 0)),                 # bias (resident)
                pl.BlockSpec((1, Lt, b_tile * P), lambda i: (i, 0, 0)),  # lane-folded mask
            ],
            out_specs=pl.BlockSpec((b_tile, P, Cp), lambda i: (i, 0, 0)),
            scratch_shapes=[pltpu.VMEM((b_tile * Lt, Cp), jnp.float32)],
        ),
        compiler_params=pltpu.CompilerParams(
            dimension_semantics=("parallel",),
            vmem_limit_bytes=vmem_limit),
    )(x2, w3, b2, m_f)

    return out[:B, :, :C]                          # strip batch / channel padding


def _reference(x, mask, weight, bias):
    """Pure-JAX reference replicating the PyTorch forward exactly."""
    cnn_out = jax.lax.conv_general_dilated(
        x, weight, window_strides=(1, 1), padding="VALID",
        dimension_numbers=("NCHW", "OIHW", "NCHW"))               # (B, C, L', 1)
    cnn_out = cnn_out[..., 0] + bias[None, :, None]               # squeeze(3) + bias
    Lp = cnn_out.shape[2]
    m = jnp.transpose(mask[:, :, :Lp], (1, 0, 2))                 # (B, P, L')
    summed = cnn_out[:, None, :, :] + m[:, :, None, :]            # (B, P, C, L')
    return jnp.max(summed, axis=3)                                # (B, P, C)


if __name__ == "__main__":
    # Small, module-consistent shapes: batch=2, cnn_layers=8, kernel=(3, emb=32),
    # seq_len=16, num_pieces=3 (standard PCNN piece masking).
    B, C, kh, W, H, P = 2, 8, 3, 32, 16, 3
    L = H

    key = jax.random.PRNGKey(0)
    kx, kw_, kb0, kb1, kb2 = jax.random.split(key, 5)

    x = jax.random.normal(kx, (B, 1, H, W), dtype=jnp.float32)
    weight = jax.random.normal(kw_, (C, 1, kh, W), dtype=jnp.float32) * 0.1
    # Module inits bias to 0.0; use a small non-zero bias to exercise the bias path.
    bias = jax.random.normal(kb0, (C,), dtype=jnp.float32) * 0.1

    # Piece masks: 0 inside a piece, -100 outside (PCNN convention), shape (P, B, L).
    b1 = 1 + jax.random.randint(kb1, (B,), 0, L // 3)
    b2 = b1 + 1 + jax.random.randint(kb2, (B,), 0, L // 3)
    t = jnp.arange(L)[None, :]                               # (1, L)
    piece0 = (t < b1[:, None])
    piece1 = (t >= b1[:, None]) & (t < b2[:, None])
    piece2 = (t >= b2[:, None])
    pieces = jnp.stack([piece0, piece1, piece2], axis=0)     # (P, B, L) bool
    mask = jnp.where(pieces, 0.0, -100.0).astype(jnp.float32)

    ref = _reference(x, mask, weight, bias)

    # f32 matmul path (exact semantics).
    out = jax.block_until_ready(cnn_with_pool(x, mask, weight, bias))
    assert out.shape == (B, P, C)
    assert jnp.allclose(out, ref, atol=1e-4, rtol=1e-4), "mismatch vs reference (f32)"

    # bf16-input matmul path (HBM-bound v5e/v6e optimization), f32 accumulation.
    out_bf16 = jax.block_until_ready(
        cnn_with_pool(x, mask, weight, bias, use_bf16_matmul=True))
    assert jnp.allclose(out_bf16, ref, atol=5e-2, rtol=5e-2), "mismatch vs reference (bf16)"

    print("KERNEL_OK")
</pallas_src>

<mosaic_0001>
module attributes {stable_mosaic.version = 11 : i64} {
  func.func @_pcnn_kernel(%arg0: i32, %arg1: memref<1x24x32xf32, #tpu.memory_space<vmem>>, %arg2: memref<3x32x128xf32, #tpu.memory_space<vmem>>, %arg3: memref<1x128xf32, #tpu.memory_space<vmem>>, %arg4: memref<1x16x3xf32, #tpu.memory_space<vmem>>, %arg5: memref<1x3x128xf32, #tpu.memory_space<vmem>>, %arg6: memref<16x128xf32, #tpu.memory_space<vmem>>) attributes {dimension_semantics = [#tpu.dimension_semantics<parallel>], iteration_bounds = array<i64: 2>, scalar_prefetch = 0 : i64, scratch_operands = 1 : i64, tpu.core_type = #tpu.core_type<tc>, window_params = [{transform_indices = @transform_0, window_bounds = array<i64: 1, 24, 32>}, {pipeline_mode = #tpu.pipeline_mode<synchronous>, transform_indices = @transform_1, window_bounds = array<i64: 3, 32, 128>}, {pipeline_mode = #tpu.pipeline_mode<synchronous>, transform_indices = @transform_2, window_bounds = array<i64: 1, 128>}, {transform_indices = @transform_3, window_bounds = array<i64: 1, 16, 3>}, {transform_indices = @transform_4, window_bounds = array<i64: 1, 3, 128>}]} {
    %c0 = arith.constant 0 : index
    %c0_0 = arith.constant 0 : index
    %c0_1 = arith.constant 0 : index
    %0 = vector.load %arg1[%c0, %c0_0, %c0_1] : memref<1x24x32xf32, #tpu.memory_space<vmem>>, vector<1x16x32xf32>
    %1 = vector.shape_cast %0 : vector<1x16x32xf32> to vector<16x32xf32>
    %c0_2 = arith.constant 0 : index
    %c0_3 = arith.constant 0 : index
    %c0_4 = arith.constant 0 : index
    %2 = vector.load %arg2[%c0_2, %c0_3, %c0_4] : memref<3x32x128xf32, #tpu.memory_space<vmem>>, vector<1x32x128xf32>
    %3 = vector.shape_cast %2 : vector<1x32x128xf32> to vector<32x128xf32>
    %cst = arith.constant dense<0.000000e+00> : vector<16x128xf32>
    %4 = tpu.matmul %1, %3, %cst {dimension_numbers = #tpu.dot_dimension_numbers<[1], [0], [0], [1], [0, 0, 1, 1], [], []>} : vector<16x32xf32>, vector<32x128xf32>, vector<16x128xf32> -> vector<16x128xf32>
    %c0_5 = arith.constant 0 : index
    %c0_6 = arith.constant 0 : index
    %5 = vector.load %arg6[%c0_5, %c0_6] : memref<16x128xf32, #tpu.memory_space<vmem>>, vector<16x128xf32>
    tpu.vector_store %arg6[%c0_5, %c0_6], %4 {strides = array<i32>} : memref<16x128xf32, #tpu.memory_space<vmem>>, vector<16x128xf32>,
    %c0_7 = arith.constant 0 : index
    %c1 = arith.constant 1 : index
    %c0_8 = arith.constant 0 : index
    %6 = vector.load %arg1[%c0_7, %c1, %c0_8] : memref<1x24x32xf32, #tpu.memory_space<vmem>>, vector<1x16x32xf32>
    %7 = vector.shape_cast %6 : vector<1x16x32xf32> to vector<16x32xf32>
    %c1_9 = arith.constant 1 : index
    %c0_10 = arith.constant 0 : index
    %c0_11 = arith.constant 0 : index
    %8 = vector.load %arg2[%c1_9, %c0_10, %c0_11] : memref<3x32x128xf32, #tpu.memory_space<vmem>>, vector<1x32x128xf32>
    %9 = vector.shape_cast %8 : vector<1x32x128xf32> to vector<32x128xf32>
    %cst_12 = arith.constant dense<0.000000e+00> : vector<16x128xf32>
    %10 = tpu.matmul %7, %9, %cst_12 {dimension_numbers = #tpu.dot_dimension_numbers<[1], [0], [0], [1], [0, 0, 1, 1], [], []>} : vector<16x32xf32>, vector<32x128xf32>, vector<16x128xf32> -> vector<16x128xf32>
    %c0_13 = arith.constant 0 : index
    %c0_14 = arith.constant 0 : index
    %11 = vector.load %arg6[%c0_13, %c0_14] : memref<16x128xf32, #tpu.memory_space<vmem>>, vector<16x128xf32>
    %12 = arith.addf %11, %10 : vector<16x128xf32>
    %c0_15 = arith.constant 0 : index
    %c0_16 = arith.constant 0 : index
    %13 = vector.load %arg6[%c0_15, %c0_16] : memref<16x128xf32, #tpu.memory_space<vmem>>, vector<16x128xf32>
    tpu.vector_store %arg6[%c0_15, %c0_16], %12 {strides = array<i32>} : memref<16x128xf32, #tpu.memory_space<vmem>>, vector<16x128xf32>,
    %c0_17 = arith.constant 0 : index
    %c2 = arith.constant 2 : index
    %c0_18 = arith.constant 0 : index
    %14 = vector.load %arg1[%c0_17, %c2, %c0_18] : memref<1x24x32xf32, #tpu.memory_space<vmem>>, vector<1x16x32xf32>
    %15 = vector.shape_cast %14 : vector<1x16x32xf32> to vector<16x32xf32>
    %c2_19 = arith.constant 2 : index
    %c0_20 = arith.constant 0 : index
    %c0_21 = arith.constant 0 : index
    %16 = vector.load %arg2[%c2_19, %c0_20, %c0_21] : memref<3x32x128xf32, #tpu.memory_space<vmem>>, vector<1x32x128xf32>
    %17 = vector.shape_cast %16 : vector<1x32x128xf32> to vector<32x128xf32>
    %cst_22 = arith.constant dense<0.000000e+00> : vector<16x128xf32>
    %18 = tpu.matmul %15, %17, %cst_22 {dimension_numbers = #tpu.dot_dimension_numbers<[1], [0], [0], [1], [0, 0, 1, 1], [], []>} : vector<16x32xf32>, vector<32x128xf32>, vector<16x128xf32> -> vector<16x128xf32>
    %c0_23 = arith.constant 0 : index
    %c0_24 = arith.constant 0 : index
    %19 = vector.load %arg6[%c0_23, %c0_24] : memref<16x128xf32, #tpu.memory_space<vmem>>, vector<16x128xf32>
    %20 = arith.addf %19, %18 : vector<16x128xf32>
    %c0_25 = arith.constant 0 : index
    %c0_26 = arith.constant 0 : index
    %21 = vector.load %arg6[%c0_25, %c0_26] : memref<16x128xf32, #tpu.memory_space<vmem>>, vector<16x128xf32>
    tpu.vector_store %arg6[%c0_25, %c0_26], %20 {strides = array<i32>} : memref<16x128xf32, #tpu.memory_space<vmem>>, vector<16x128xf32>,
    %c0_27 = arith.constant 0 : index
    %c0_28 = arith.constant 0 : index
    %22 = vector.load %arg3[%c0_27, %c0_28] : memref<1x128xf32, #tpu.memory_space<vmem>>, vector<1x128xf32>
    %c0_29 = arith.constant 0 : index
    %c0_30 = arith.constant 0 : index
    %23 = vector.load %arg6[%c0_29, %c0_30] : memref<16x128xf32, #tpu.memory_space<vmem>>, vector<16x128xf32>
    %c0_31 = arith.constant 0 : index
    %c0_32 = arith.constant 0 : index
    %c0_33 = arith.constant 0 : index
    %24 = vector.load %arg4[%c0_31, %c0_32, %c0_33] : memref<1x16x3xf32, #tpu.memory_space<vmem>>, vector<1x16x1xf32>
    %25 = vector.shape_cast %24 : vector<1x16x1xf32> to vector<16x1xf32>
    %26 = vector.broadcast %25 : vector<16x1xf32> to vector<16x128xf32>
    %27 = arith.addf %23, %26 : vector<16x128xf32>
    %cst_34 = arith.constant dense<0xFF800000> : vector<128xf32>
    %28 = vector.multi_reduction <maximumf>, %27, %cst_34 [0] : vector<16x128xf32> to vector<128xf32>
    %29 = vector.shape_cast %28 : vector<128xf32> to vector<1x128xf32>
    %c0_35 = arith.constant 0 : index
    %c0_36 = arith.constant 0 : index
    %c1_37 = arith.constant 1 : index
    %30 = vector.load %arg4[%c0_35, %c0_36, %c1_37] : memref<1x16x3xf32, #tpu.memory_space<vmem>>, vector<1x16x1xf32>
    %31 = vector.shape_cast %30 : vector<1x16x1xf32> to vector<16x1xf32>
    %32 = vector.broadcast %31 : vector<16x1xf32> to vector<16x128xf32>
    %33 = arith.addf %23, %32 : vector<16x128xf32>
    %cst_38 = arith.constant dense<0xFF800000> : vector<128xf32>
    %34 = vector.multi_reduction <maximumf>, %33, %cst_38 [0] : vector<16x128xf32> to vector<128xf32>
    %35 = vector.shape_cast %34 : vector<128xf32> to vector<1x128xf32>
    %c0_39 = arith.constant 0 : index
    %c0_40 = arith.constant 0 : index
    %c2_41 = arith.constant 2 : index
    %36 = vector.load %arg4[%c0_39, %c0_40, %c2_41] : memref<1x16x3xf32, #tpu.memory_space<vmem>>, vector<1x16x1xf32>
    %37 = vector.shape_cast %36 : vector<1x16x1xf32> to vector<16x1xf32>
    %38 = vector.broadcast %37 : vector<16x1xf32> to vector<16x128xf32>
    %39 = arith.addf %23, %38 : vector<16x128xf32>
    %cst_42 = arith.constant dense<0xFF800000> : vector<128xf32>
    %40 = vector.multi_reduction <maximumf>, %39, %cst_42 [0] : vector<16x128xf32> to vector<128xf32>
    %41 = vector.shape_cast %40 : vector<128xf32> to vector<1x128xf32>
    %42 = tpu.concatenate %29, %35, %41 in 0 : vector<1x128xf32>, vector<1x128xf32>, vector<1x128xf32> -> vector<3x128xf32>
    %43 = vector.broadcast %22 : vector<1x128xf32> to vector<3x128xf32>
    %44 = arith.addf %42, %43 : vector<3x128xf32>
    %c0_43 = arith.constant 0 : index
    %c0_44 = arith.constant 0 : index
    %c0_45 = arith.constant 0 : index
    %45 = vector.load %arg5[%c0_43, %c0_44, %c0_45] : memref<1x3x128xf32, #tpu.memory_space<vmem>>, vector<1x3x128xf32>
    %46 = vector.shape_cast %45 : vector<1x3x128xf32> to vector<3x128xf32>
    %47 = vector.shape_cast %44 : vector<3x128xf32> to vector<1x3x128xf32>
    tpu.vector_store %arg5[%c0_43, %c0_44, %c0_45], %47 {strides = array<i32>} : memref<1x3x128xf32, #tpu.memory_space<vmem>>, vector<1x3x128xf32>,
    return
  }
  func.func @transform_0(%arg0: i32) -> (i32, i32, i32) {
    %c0_i32 = arith.constant 0 : i32
    %c0_i32_0 = arith.constant 0 : i32
    %c0_i32_1 = arith.constant 0 : i32
    return %arg0, %c0_i32, %c0_i32_0 : i32, i32, i32
  }
  func.func @transform_1(%arg0: i32) -> (i32, i32, i32) {
    %c0_i32 = arith.constant 0 : i32
    %c0_i32_0 = arith.constant 0 : i32
    %c0_i32_1 = arith.constant 0 : i32
    %c0_i32_2 = arith.constant 0 : i32
    return %c0_i32, %c0_i32_0, %c0_i32_1 : i32, i32, i32
  }
  func.func @transform_2(%arg0: i32) -> (i32, i32) {
    %c0_i32 = arith.constant 0 : i32
    %c0_i32_0 = arith.constant 0 : i32
    %c0_i32_1 = arith.constant 0 : i32
    return %c0_i32, %c0_i32_0 : i32, i32
  }
  func.func @transform_3(%arg0: i32) -> (i32, i32, i32) {
    %c0_i32 = arith.constant 0 : i32
    %c0_i32_0 = arith.constant 0 : i32
    %c0_i32_1 = arith.constant 0 : i32
    return %arg0, %c0_i32, %c0_i32_0 : i32, i32, i32
  }
  func.func @transform_4(%arg0: i32) -> (i32, i32, i32) {
    %c0_i32 = arith.constant 0 : i32
    %c0_i32_0 = arith.constant 0 : i32
    %c0_i32_1 = arith.constant 0 : i32
    return %arg0, %c0_i32, %c0_i32_0 : i32, i32, i32
  }
}

</mosaic_0001>

<llo_original>
// kernel: tpu_custom_call.1
$region0: #{tpu_custom_call.1}
  #allocation0 [shape = 'u32[]', space=smem, size = 0x4, offset = 0x4, fixed_abs, tag = 'smem constant byte address 0x4 - core index']
  #allocation1 [shape = 'u32[144,128]{1,0:T(1,128)}', space=vmem, size = 0x12000, scoped, tag = 'internal scratch']
  #allocation2 [shape = 'f32[16,128]{1,0:T(8,128)}', space=vmem, size = 0x2000, scoped, tag = 'scratch operand']
  %s0 = inlined_call_operand.hbm [shape: f32[2,24,32], index: 0, kind: input, shape index: {}]
  %s1 = inlined_call_operand.hbm [shape: f32[3,32,128], index: 1, kind: input, shape index: {}]
  %s2 = inlined_call_operand.vmem [shape: f32[1,128], index: 2, kind: input, shape index: {}]
  %s3 = inlined_call_operand.vmem [shape: f32[2,16,3], index: 3, kind: input, shape index: {}]
  %s4 = inlined_call_operand.vmem [shape: f32[2,3,128], index: 4, kind: output, shape index: {}]
  %s5 = sld [smem:[#allocation0]]
  $region57: #{tpu_custom_call.1} parent=0
    _
  %s7 = ssub.s32 1, %s5
  %s8 = scalar_select 0, %s7, %s5
  $region1: #{tpu_custom_call.1} parent=0
    #allocation3 [shape = 'u8[24576]{0}', space=vmem, size = 0x6000, scoped, tag = 'input window, operand 0']
    #allocation4 [shape = 's32[2]{0}', space=sflag, size = 0x8, scoped, tag = 'scoped memory for tpu_custom_call.1']
    #allocation5 [shape = 'u8[49152]{0}', space=vmem, size = 0xc000, scoped, tag = 'input window, operand 1, single buffered']
    #allocation6 [shape = 's32[1]{0}', space=sflag, size = 0x4, scoped, tag = 'scoped memory for tpu_custom_call.1']
    %9 = vsyncpa [#allocation4], 0
    %s10 = scalar_lea.sflag [#allocation4], 1
    %11 = vsyncpa %s10, 0
    %12 = vsyncpa [#allocation6], 0
    loop: start=0, step=1, limit=4
    $region2: #{tpu_custom_call.1} parent=1 // loop_pre_header
      _
    $region3: #{tpu_custom_call.1} parent=1 // loop_header
      %s14 = sphi 0, %s18
      %p15 = scmp.ge.s32.totalorder %s14, 4
      %s24 = sphi 0, %s26
      %s27 = sphi 0, %s24
      %s28 = sphi 0, %s27
      %s44 = sphi 0, %s28
      %s48 = sphi 0, %s48
      %s50 = sphi 0, %s48
      %s51 = sphi 0, %s50
      %s65 = sphi 0, %s51
      %s69 = sphi 0, %s69
      %s71 = sphi 0, %s69
      %s72 = sphi 0, %s71
      %s86 = sphi 0, %s72
      %s92 = sphi 0, %s94
      %s95 = sphi 0, %s92
      %s96 = sphi 0, %s95
      %s112 = sphi 0, %s96
      %s118 = sphi 0, %s120
      %s121 = sphi 0, %s118
      %s122 = sphi 0, %s121
      %s138 = sphi 0, %s122
    $region4: #{tpu_custom_call.1} parent=1 // loop_header_branch
      %17 = sbr.rel (%p15) target = $region8
    $region5: #{tpu_custom_call.1} parent=1 // loop_body
      %s19 = ssub.s32 %s14, 1
      %s20 = ssub.s32 %s14, 2
      %s21 = sadd.s32 %s14, 1
      %s22 = ssub.s32 %s14, %s21
      %p23 = scmp.eq.s32.totalorder %s22, 0
      %s25 = sadd.s32 %s24, 1
      %s26 = scalar_select %p23, %s24, %s25
      %p29 = pneg %p23
      %p30 = scmp.eq.s32.totalorder %s14, 1
      %p31 = por %p29, %p30
      %p32 = scmp.ne.s32.totalorder %s24, %s27
      %p33 = scmp.eq.s32.totalorder %s14, 0
      %p34 = por %p32, %p33
      %p35 = scmp.ne.s32.totalorder %s24, %s27
      %p36 = scmp.eq.s32.totalorder %s19, 1
      %p37 = por %p35, %p36
      %p38 = scmp.ne.s32.totalorder %s27, %s28
      %p39 = scmp.eq.s32.totalorder %s19, 0
      %p40 = por %p38, %p39
      %p41 = scmp.ne.s32.totalorder %s27, %s28
      %p42 = scmp.eq.s32.totalorder %s20, 1
      %p43 = por %p41, %p42
      %p45 = scmp.ne.s32.totalorder %s28, %s44
      %p46 = scmp.eq.s32.totalorder %s20, 0
      %p47 = por %p45, %p46
      %s49 = sadd.s32 %s48, 1
      %p52 = scmp.eq.s32.totalorder %s14, 1
      %p53 = scmp.ne.s32.totalorder %s48, %s50
      %p54 = scmp.eq.s32.totalorder %s14, 0
      %p55 = por %p53, %p54
      %p56 = scmp.ne.s32.totalorder %s48, %s50
      %p57 = scmp.eq.s32.totalorder %s19, 1
      %p58 = por %p56, %p57
      %p59 = scmp.ne.s32.totalorder %s50, %s51
      %p60 = scmp.eq.s32.totalorder %s19, 0
      %p61 = por %p59, %p60
      %p62 = scmp.ne.s32.totalorder %s50, %s51
      %p63 = scmp.eq.s32.totalorder %s20, 1
      %p64 = por %p62, %p63
      %p66 = scmp.ne.s32.totalorder %s51, %s65
      %p67 = scmp.eq.s32.totalorder %s20, 0
      %p68 = por %p66, %p67
      %s70 = sadd.s32 %s69, 1
      %p73 = scmp.eq.s32.totalorder %s14, 1
      %p74 = scmp.ne.s32.totalorder %s69, %s71
      %p75 = scmp.eq.s32.totalorder %s14, 0
      %p76 = por %p74, %p75
      %p77 = scmp.ne.s32.totalorder %s69, %s71
      %p78 = scmp.eq.s32.totalorder %s19, 1
      %p79 = por %p77, %p78
      %p80 = scmp.ne.s32.totalorder %s71, %s72
      %p81 = scmp.eq.s32.totalorder %s19, 0
      %p82 = por %p80, %p81
      %p83 = scmp.ne.s32.totalorder %s71, %s72
      %p84 = scmp.eq.s32.totalorder %s20, 1
      %p85 = por %p83, %p84
      %p87 = scmp.ne.s32.totalorder %s72, %s86
      %p88 = scmp.eq.s32.totalorder %s20, 0
      %p89 = por %p87, %p88
      %s90 = ssub.s32 %s14, %s21
      %p91 = scmp.eq.s32.totalorder %s90, 0
      %s93 = sadd.s32 %s92, 1
      %s94 = scalar_select %p91, %s92, %s93
      %p97 = pneg %p91
      %p98 = scmp.eq.s32.totalorder %s14, 1
      %p99 = por %p97, %p98
      %p100 = scmp.ne.s32.totalorder %s92, %s95
      %p101 = scmp.eq.s32.totalorder %s14, 0
      %p102 = por %p100, %p101
      %p103 = scmp.ne.s32.totalorder %s92, %s95
      %p104 = scmp.eq.s32.totalorder %s19, 1
      %p105 = por %p103, %p104
      %p106 = scmp.ne.s32.totalorder %s95, %s96
      %p107 = scmp.eq.s32.totalorder %s19, 0
      %p108 = por %p106, %p107
      %p109 = scmp.ne.s32.totalorder %s95, %s96
      %p110 = scmp.eq.s32.totalorder %s20, 1
      %p111 = por %p109, %p110
      %p113 = scmp.ne.s32.totalorder %s96, %s112
      %p114 = scmp.eq.s32.totalorder %s20, 0
      %p115 = por %p113, %p114
      %s116 = ssub.s32 %s14, %s21
      %p117 = scmp.eq.s32.totalorder %s116, 0
      %s119 = sadd.s32 %s118, 1
      %s120 = scalar_select %p117, %s118, %s119
      %p123 = pneg %p117
      %p124 = scmp.eq.s32.totalorder %s14, 1
      %p125 = por %p123, %p124
      %p126 = scmp.ne.s32.totalorder %s118, %s121
      %p127 = scmp.eq.s32.totalorder %s14, 0
      %p128 = por %p126, %p127
      %p129 = scmp.ne.s32.totalorder %s118, %s121
      %p130 = scmp.eq.s32.totalorder %s19, 1
      %p131 = por %p129, %p130
      %p132 = scmp.ne.s32.totalorder %s121, %s122
      %p133 = scmp.eq.s32.totalorder %s19, 0
      %p134 = por %p132, %p133
      %p135 = scmp.ne.s32.totalorder %s121, %s122
      %p136 = scmp.eq.s32.totalorder %s20, 1
      %p137 = por %p135, %p136
      %p139 = scmp.ne.s32.totalorder %s122, %s138
      %p140 = scmp.eq.s32.totalorder %s20, 0
      %p141 = por %p139, %p140
      %p142 = scmp.le.s32.totalorder 1, %s14
      %p143 = scmp.lt.s32.totalorder %s14, 3
      %p144 = pnand %p142, %p143
      %p145 = pneg %p144
      // Predicated region
      $region9: #{tpu_custom_call.1} parent=5 // pred_check
        _
      $region10: #{tpu_custom_call.1} parent=5 // pred_check_branch
        %147 = sbr.rel (%p144) target = $region12
      $region11: #{tpu_custom_call.1} parent=5 // pred_region
        %s148 = ssub.s32 %s14, 1
        // Predicated region
        $region13: #{tpu_custom_call.1} parent=11 // pred_check
          %p149 = pneg %p61
        $region14: #{tpu_custom_call.1} parent=11 // pred_check_branch
          %151 = sbr.rel (%p149) target = $region16
        $region15: #{tpu_custom_call.1} parent=11 // pred_region
          %s153 = ssub.s32 1536, 1536
          %154 = vsyncadd [#allocation6], %s153
          %s155 = sshll.u32 [#allocation5], 4
          %s156 = int_to_ptr.vmem [resolvable:$true] %s155
          %161 = dma.hbm_to_vmem [thread:$0]  %s1, 1536, %s156, [#allocation6], 128, 128, 8
        $region16: #{tpu_custom_call.1} parent=11 // pred_fallthru
          _
        // Predicated region
        $region17: #{tpu_custom_call.1} parent=11 // pred_check
          %p162 = pneg %p82
        $region18: #{tpu_custom_call.1} parent=11 // pred_check_branch
          %164 = sbr.rel (%p162) target = $region20
        $region19: #{tpu_custom_call.1} parent=11 // pred_region
          _
        $region20: #{tpu_custom_call.1} parent=11 // pred_fallthru
          _
      $region12: #{tpu_custom_call.1} parent=5 // pred_fallthru
        _
      %p165 = scmp.lt.s32.totalorder %s14, 2
      // Predicated region
      $region21: #{tpu_custom_call.1} parent=5 // pred_check
        %p166 = pneg %p165
      $region22: #{tpu_custom_call.1} parent=5 // pred_check_branch
        %168 = sbr.rel (%p166) target = $region24
      $region23: #{tpu_custom_call.1} parent=5 // pred_region
        // Predicated region
        $region25: #{tpu_custom_call.1} parent=23 // pred_check
          %p169 = pneg %p34
        $region26: #{tpu_custom_call.1} parent=23 // pred_check_branch
          %171 = sbr.rel (%p169) target = $region28
        $region27: #{tpu_custom_call.1} parent=23 // pred_region
          %s172 = sand.u32 %s24, 1
          %s173 = scalar_lea.sflag [#allocation4], %s172
          %s174 = sand.u32 %s24, 1
          %s175 = smul.addr %s174, 24
          %s176 = scalar_lea.vmem [#allocation3], %s175
          %s178 = ssub.s32 384, 384
          %179 = vsyncadd %s173, %s178
          %s180 = smul.addr %s14, 3
          %s181 = smul.addr %s180, 128
          %s182 = scalar_lea.hbm %s0, %s181
          %s183 = sshll.u32 %s176, 4
          %s184 = int_to_ptr.vmem [resolvable:$true] %s183
          %189 = dma.hbm_to_vmem [thread:$0]  %s182, 384, %s184, %s173, 128, 128, 8
        $region28: #{tpu_custom_call.1} parent=23 // pred_fallthru
          _
        // Predicated region
        $region29: #{tpu_custom_call.1} parent=23 // pred_check
          %p190 = pneg %p102
        $region30: #{tpu_custom_call.1} parent=23 // pred_check_branch
          %192 = sbr.rel (%p190) target = $region32
        $region31: #{tpu_custom_call.1} parent=23 // pred_region
          %p193 = scmp.lt.s32.totalorder %s14, 1
          %s194 = scalar_select %p193, %s14, 1
          %s195 = smul.addr %s194, 2
          %s196 = smul.addr %s195, 8
          %s197 = scalar_lea.vmem %s3, %s196
        $region32: #{tpu_custom_call.1} parent=23 // pred_fallthru
          _
      $region24: #{tpu_custom_call.1} parent=5 // pred_fallthru
        _
      %p198 = scmp.le.s32.totalorder 1, %s14
      %p199 = scmp.lt.s32.totalorder %s14, 3
      %p200 = pnand %p198, %p199
      %p201 = pneg %p200
      // Predicated region
      $region33: #{tpu_custom_call.1} parent=5 // pred_check
        _
      $region34: #{tpu_custom_call.1} parent=5 // pred_check_branch
        %203 = sbr.rel (%p200) target = $region36
      $region35: #{tpu_custom_call.1} parent=5 // pred_region
        %s204 = ssub.s32 %s14, 1
        %s205 = sand.u32 %s27, 1
        %s206 = scalar_lea.sflag [#allocation4], %s205
        %s207 = sand.u32 %s27, 1
        %s208 = smul.addr %s207, 24
        %s209 = scalar_lea.vmem [#allocation3], %s208
        // Predicated region
        $region37: #{tpu_custom_call.1} parent=35 // pred_check
          %p210 = pneg %p40
        $region38: #{tpu_custom_call.1} parent=35 // pred_check_branch
          %212 = sbr.rel (%p210) target = $region40
        $region39: #{tpu_custom_call.1} parent=35 // pred_region
          %213 = dma.done %s206, 384
        $region40: #{tpu_custom_call.1} parent=35 // pred_fallthru
          _
        // Predicated region
        $region41: #{tpu_custom_call.1} parent=35 // pred_check
          %p214 = pneg %p61
        $region42: #{tpu_custom_call.1} parent=35 // pred_check_branch
          %216 = sbr.rel (%p214) target = $region44
        $region43: #{tpu_custom_call.1} parent=35 // pred_region
          %217 = dma.done [#allocation6], 1536
        $region44: #{tpu_custom_call.1} parent=35 // pred_fallthru
          _
        %s218 = sand.u32 %s27, 1
        %s219 = scalar_lea.sflag [#allocation4], %s218
        %s220 = sand.u32 %s27, 1
        %s221 = smul.addr %s220, 24
        %s222 = scalar_lea.vmem [#allocation3], %s221
        %p223 = pneg %p40
        %p224 = pneg %p37
        %p225 = pneg %p61
        %p226 = pneg %p58
        %p227 = pneg %p82
        %p228 = pneg %p79
        %p229 = scmp.lt.s32.totalorder %s19, 1
        %s230 = scalar_select %p229, %s19, 1
        %s231 = smul.addr %s230, 2
        %s232 = smul.addr %s231, 8
        %s233 = scalar_lea.vmem %s3, %s232
        %p234 = pneg %p108
        %p235 = pneg %p105
        %p236 = pneg %p134
        %p237 = pneg %p131
        %p238 = scmp.lt.s32.totalorder %s19, 1
        %s239 = scalar_select %p238, %s19, 1
        %s240 = smul.addr %s239, 4
        %s241 = scalar_lea.vmem %s4, %s240
        %p242 = scmp.lt.s32.totalorder %s19, 1
        %s243 = scalar_select %p242, %s19, 1
        %s244 = smul.addr %s243, 2
        %s245 = smul.addr %s244, 8
        %s246 = scalar_lea.vmem %s3, %s245
        %p247 = scmp.lt.s32.totalorder %s19, 1
        %s248 = scalar_select %p247, %s19, 1
        %s249 = smul.addr %s248, 4
        %s250 = scalar_lea.vmem %s4, %s249
        %v251 = vld [vmem:[%s209] sm:$0xff]
        %v252 = vld [vmem:[%s209 + $0x8] sm:$0xff]
        %v253 = vld [vmem:[#allocation5] sm:$0xff]
        %v254 = vld [vmem:[#allocation5 + $0x8] sm:$0xff]
        %v255 = vld [vmem:[#allocation5 + $0x10] sm:$0xff]
        %v256 = vld [vmem:[#allocation5 + $0x18] sm:$0xff]
        %vm257 = vcmask 261120
        %v259 = vsel %vm257, %v251, 0
        %v262 = vsel %vm257, %v252, 0
        %264 = vmatprep.subr.mxu0 0.0
        %265 = vmatpush1.msra.mxu0 %v253
        %266 = vmatprep.subr.mxu0 0.0
        %267 = vmatpush1.msra.mxu0 %v254
        %268 = vmatprep.subr.mxu0 0.0
        %269 = vmatpush1.msra.mxu0 %v255
        %270 = vmatprep.subr.mxu0 0.0
        %271 = vmatpush1.msra.mxu0 %v256
        %272 = vmatprep.subr.mxu0 0.0
        %273 = vmatpush1.msra.mxu0 0.0
        %274 = vmatprep.subr.mxu0 0.0
        %275 = vmatpush1.msra.mxu0 0.0
        %276 = vmatprep.subr.mxu0 0.0
        %277 = vmatpush1.msra.mxu0 0.0
        %278 = vmatprep.subr.mxu0 0.0
        %279 = vmatpush1.msra.mxu0 0.0
        %280 = vmatprep.subr.mxu0 0.0
        %281 = vmatpush1.msra.mxu0 0.0
        %282 = vmatprep.subr.mxu0 0.0
        %283 = vmatpush1.msra.mxu0 0.0
        %284 = vmatprep.subr.mxu0 0.0
        %285 = vmatpush1.msra.mxu0 0.0
        %286 = vmatprep.subr.mxu0 0.0
        %287 = vmatpush1.msra.mxu0 0.0
        %288 = vmatprep.subr.mxu0 0.0
        %289 = vmatpush1.msra.mxu0 0.0
        %290 = vmatprep.subr.mxu0 0.0
        %291 = vmatpush1.msra.mxu0 0.0
        %292 = vmatprep.subr.mxu0 0.0
        %293 = vmatpush1.msra.mxu0 0.0
        %294 = vmatprep.subr.mxu0 0.0
        %295 = vmatpush1.msra.mxu0 0.0
        %296 = vmatprep.subr.mxu0 0.0
        %297 = vmatpush1.msra.mxu0 0.0
        %298 = vmatprep.subr.mxu0 0.0
        %299 = vmatpush1.msra.mxu0 0.0
        %300 = vmatprep.subr.mxu0 0.0
        %301 = vmatpush1.msra.mxu0 0.0
        %302 = vmatprep.subr.mxu0 0.0
        %303 = vmatpush1.msra.mxu0 0.0
        %304 = vmatprep.subr.mxu0 0.0
        %305 = vmatpush1.msra.mxu0 0.0
        %306 = vmatprep.subr.mxu0 0.0
        %307 = vmatpush1.msra.mxu0 0.0
        %308 = vmatprep.subr.mxu0 0.0
        %309 = vmatpush1.msra.mxu0 0.0
        %310 = vmatprep.subr.mxu0 0.0
        %311 = vmatpush1.msra.mxu0 0.0
        %312 = vmatprep.subr.mxu0 0.0
        %313 = vmatpush1.msra.mxu0 0.0
        %314 = vmatprep.subr.mxu0 0.0
        %315 = vmatpush1.msra.mxu0 0.0
        %316 = vmatprep.subr.mxu0 0.0
        %317 = vmatpush1.msra.mxu0 0.0
        %318 = vmatprep.subr.mxu0 0.0
        %319 = vmatpush1.msra.mxu0 0.0
        %320 = vmatprep.subr.mxu0 0.0
        %321 = vmatpush1.msra.mxu0 0.0
        %322 = vmatprep.subr.mxu0 0.0
        %323 = vmatpush1.msra.mxu0 0.0
        %324 = vmatprep.subr.mxu0 0.0
        %325 = vmatpush1.msra.mxu0 0.0
        %326 = vmatprep.subr.mxu0 0.0
        %327 = vmatpush1.msra.mxu0 0.0
        %328 = vmatprep.mubr.f32.mxu0 0.0
        %329 = vmatmul.mubr.f32.gmra.mrb[0].mxu0 %v259
        %v330 = vpop.f32.mrb[0].mxu0
        %v331 = vadd.f32 0.0, %v330
        %v332 = vpop.f32.mrb[0].mxu0
        %333 = vmatprep.mubr.f32.mxu0 0.0
        %334 = vmatmul.mubr.f32.gmra.mrb[0].mxu0 %v262
        %v335 = vpop.f32.mrb[0].mxu0
        %v336 = vadd.f32 0.0, %v335
        %v337 = vpop.f32.mrb[0].mxu0
        %338 = vdwg.mxu0
        %339 = vst [vmem:[#allocation2] sm:$0xff] %v331
        %340 = vst [vmem:[#allocation2 + $0x8] sm:$0xff] %v336
        %v341 = vld [vmem:[%s209 + $0x1] sm:$0xff]
        %v342 = vld [vmem:[%s209 + $0x9] sm:$0xff]
        %s343 = scalar_lea.vmem [#allocation5], 32
        %v344 = vld [vmem:[%s343] sm:$0xff]
        %v345 = vld [vmem:[%s343 + $0x8] sm:$0xff]
        %v346 = vld [vmem:[%s343 + $0x10] sm:$0xff]
        %v347 = vld [vmem:[%s343 + $0x18] sm:$0xff]
        %v349 = vsel %vm257, %v341, 0
        %v352 = vsel %vm257, %v342, 0
        %354 = vmatprep.subr.mxu0 0.0
        %355 = vmatpush1.msra.mxu0 %v344
        %356 = vmatprep.subr.mxu0 0.0
        %357 = vmatpush1.msra.mxu0 %v345
        %358 = vmatprep.subr.mxu0 0.0
        %359 = vmatpush1.msra.mxu0 %v346
        %360 = vmatprep.subr.mxu0 0.0
        %361 = vmatpush1.msra.mxu0 %v347
        %362 = vmatprep.subr.mxu0 0.0
        %363 = vmatpush1.msra.mxu0 0.0
        %364 = vmatprep.subr.mxu0 0.0
        %365 = vmatpush1.msra.mxu0 0.0
        %366 = vmatprep.subr.mxu0 0.0
        %367 = vmatpush1.msra.mxu0 0.0
        %368 = vmatprep.subr.mxu0 0.0
        %369 = vmatpush1.msra.mxu0 0.0
        %370 = vmatprep.subr.mxu0 0.0
        %371 = vmatpush1.msra.mxu0 0.0
        %372 = vmatprep.subr.mxu0 0.0
        %373 = vmatpush1.msra.mxu0 0.0
        %374 = vmatprep.subr.mxu0 0.0
        %375 = vmatpush1.msra.mxu0 0.0
        %376 = vmatprep.subr.mxu0 0.0
        %377 = vmatpush1.msra.mxu0 0.0
        %378 = vmatprep.subr.mxu0 0.0
        %379 = vmatpush1.msra.mxu0 0.0
        %380 = vmatprep.subr.mxu0 0.0
        %381 = vmatpush1.msra.mxu0 0.0
        %382 = vmatprep.subr.mxu0 0.0
        %383 = vmatpush1.msra.mxu0 0.0
        %384 = vmatprep.subr.mxu0 0.0
        %385 = vmatpush1.msra.mxu0 0.0
        %386 = vmatprep.subr.mxu0 0.0
        %387 = vmatpush1.msra.mxu0 0.0
        %388 = vmatprep.subr.mxu0 0.0
        %389 = vmatpush1.msra.mxu0 0.0
        %390 = vmatprep.subr.mxu0 0.0
        %391 = vmatpush1.msra.mxu0 0.0
        %392 = vmatprep.subr.mxu0 0.0
        %393 = vmatpush1.msra.mxu0 0.0
        %394 = vmatprep.subr.mxu0 0.0
        %395 = vmatpush1.msra.mxu0 0.0
        %396 = vmatprep.subr.mxu0 0.0
        %397 = vmatpush1.msra.mxu0 0.0
        %398 = vmatprep.subr.mxu0 0.0
        %399 = vmatpush1.msra.mxu0 0.0
        %400 = vmatprep.subr.mxu0 0.0
        %401 = vmatpush1.msra.mxu0 0.0
        %402 = vmatprep.subr.mxu0 0.0
        %403 = vmatpush1.msra.mxu0 0.0
        %404 = vmatprep.subr.mxu0 0.0
        %405 = vmatpush1.msra.mxu0 0.0
        %406 = vmatprep.subr.mxu0 0.0
        %407 = vmatpush1.msra.mxu0 0.0
        %408 = vmatprep.subr.mxu0 0.0
        %409 = vmatpush1.msra.mxu0 0.0
        %410 = vmatprep.subr.mxu0 0.0
        %411 = vmatpush1.msra.mxu0 0.0
        %412 = vmatprep.subr.mxu0 0.0
        %413 = vmatpush1.msra.mxu0 0.0
        %414 = vmatprep.subr.mxu0 0.0
        %415 = vmatpush1.msra.mxu0 0.0
        %416 = vmatprep.subr.mxu0 0.0
        %417 = vmatpush1.msra.mxu0 0.0
        %418 = vmatprep.mubr.f32.mxu0 0.0
        %419 = vmatmul.mubr.f32.gmra.mrb[0].mxu0 %v349
        %v420 = vpop.f32.mrb[0].mxu0
        %v421 = vadd.f32 0.0, %v420
        %v422 = vpop.f32.mrb[0].mxu0
        %423 = vmatprep.mubr.f32.mxu0 0.0
        %424 = vmatmul.mubr.f32.gmra.mrb[0].mxu0 %v352
        %v425 = vpop.f32.mrb[0].mxu0
        %v426 = vadd.f32 0.0, %v425
        %v427 = vpop.f32.mrb[0].mxu0
        %428 = vdwg.mxu0
        %v429 = vld [vmem:[#allocation2] sm:$0xff]
        %v430 = vld [vmem:[#allocation2 + $0x8] sm:$0xff]
        %v431 = vadd.f32 %v429, %v421
        %v432 = vadd.f32 %v430, %v426
        %433 = vst [vmem:[#allocation2] sm:$0xff] %v431
        %434 = vst [vmem:[#allocation2 + $0x8] sm:$0xff] %v432
        %v435 = vld [vmem:[%s209 + $0x2] sm:$0xff]
        %v436 = vld [vmem:[%s209 + $0xa] sm:$0xff]
        %s437 = scalar_lea.vmem [#allocation5], 64
        %v438 = vld [vmem:[%s437] sm:$0xff]
        %v439 = vld [vmem:[%s437 + $0x8] sm:$0xff]
        %v440 = vld [vmem:[%s437 + $0x10] sm:$0xff]
        %v441 = vld [vmem:[%s437 + $0x18] sm:$0xff]
        %v443 = vsel %vm257, %v435, 0
        %v446 = vsel %vm257, %v436, 0
        %448 = vmatprep.subr.mxu0 0.0
        %449 = vmatpush1.msra.mxu0 %v438
        %450 = vmatprep.subr.mxu0 0.0
        %451 = vmatpush1.msra.mxu0 %v439
        %452 = vmatprep.subr.mxu0 0.0
        %453 = vmatpush1.msra.mxu0 %v440
        %454 = vmatprep.subr.mxu0 0.0
        %455 = vmatpush1.msra.mxu0 %v441
        %456 = vmatprep.subr.mxu0 0.0
        %457 = vmatpush1.msra.mxu0 0.0
        %458 = vmatprep.subr.mxu0 0.0
        %459 = vmatpush1.msra.mxu0 0.0
        %460 = vmatprep.subr.mxu0 0.0
        %461 = vmatpush1.msra.mxu0 0.0
        %462 = vmatprep.subr.mxu0 0.0
        %463 = vmatpush1.msra.mxu0 0.0
        %464 = vmatprep.subr.mxu0 0.0
        %465 = vmatpush1.msra.mxu0 0.0
        %466 = vmatprep.subr.mxu0 0.0
        %467 = vmatpush1.msra.mxu0 0.0
        %468 = vmatprep.subr.mxu0 0.0
        %469 = vmatpush1.msra.mxu0 0.0
        %470 = vmatprep.subr.mxu0 0.0
        %471 = vmatpush1.msra.mxu0 0.0
        %472 = vmatprep.subr.mxu0 0.0
        %473 = vmatpush1.msra.mxu0 0.0
        %474 = vmatprep.subr.mxu0 0.0
        %475 = vmatpush1.msra.mxu0 0.0
        %476 = vmatprep.subr.mxu0 0.0
        %477 = vmatpush1.msra.mxu0 0.0
        %478 = vmatprep.subr.mxu0 0.0
        %479 = vmatpush1.msra.mxu0 0.0
        %480 = vmatprep.subr.mxu0 0.0
        %481 = vmatpush1.msra.mxu0 0.0
        %482 = vmatprep.subr.mxu0 0.0
        %483 = vmatpush1.msra.mxu0 0.0
        %484 = vmatprep.subr.mxu0 0.0
        %485 = vmatpush1.msra.mxu0 0.0
        %486 = vmatprep.subr.mxu0 0.0
        %487 = vmatpush1.msra.mxu0 0.0
        %488 = vmatprep.subr.mxu0 0.0
        %489 = vmatpush1.msra.mxu0 0.0
        %490 = vmatprep.subr.mxu0 0.0
        %491 = vmatpush1.msra.mxu0 0.0
        %492 = vmatprep.subr.mxu0 0.0
        %493 = vmatpush1.msra.mxu0 0.0
        %494 = vmatprep.subr.mxu0 0.0
        %495 = vmatpush1.msra.mxu0 0.0
        %496 = vmatprep.subr.mxu0 0.0
        %497 = vmatpush1.msra.mxu0 0.0
        %498 = vmatprep.subr.mxu0 0.0
        %499 = vmatpush1.msra.mxu0 0.0
        %500 = vmatprep.subr.mxu0 0.0
        %501 = vmatpush1.msra.mxu0 0.0
        %502 = vmatprep.subr.mxu0 0.0
        %503 = vmatpush1.msra.mxu0 0.0
        %504 = vmatprep.subr.mxu0 0.0
        %505 = vmatpush1.msra.mxu0 0.0
        %506 = vmatprep.subr.mxu0 0.0
        %507 = vmatpush1.msra.mxu0 0.0
        %508 = vmatprep.subr.mxu0 0.0
        %509 = vmatpush1.msra.mxu0 0.0
        %510 = vmatprep.subr.mxu0 0.0
        %511 = vmatpush1.msra.mxu0 0.0
        %512 = vmatprep.mubr.f32.mxu0 0.0
        %513 = vmatmul.mubr.f32.gmra.mrb[0].mxu0 %v443
        %v514 = vpop.f32.mrb[0].mxu0
        %v515 = vadd.f32 0.0, %v514
        %v516 = vpop.f32.mrb[0].mxu0
        %517 = vmatprep.mubr.f32.mxu0 0.0
        %518 = vmatmul.mubr.f32.gmra.mrb[0].mxu0 %v446
        %v519 = vpop.f32.mrb[0].mxu0
        %v520 = vadd.f32 0.0, %v519
        %v521 = vpop.f32.mrb[0].mxu0
        %522 = vdwg.mxu0
        %v523 = vld [vmem:[#allocation2] sm:$0xff]
        %v524 = vld [vmem:[#allocation2 + $0x8] sm:$0xff]
        %v525 = vadd.f32 %v523, %v515
        %v526 = vadd.f32 %v524, %v520
        %527 = vst [vmem:[#allocation2] sm:$0xff] %v525
        %528 = vst [vmem:[#allocation2 + $0x8] sm:$0xff] %v526
        %v529 = vld [vmem:[%s2] sm:$0x1]
        %v530 = vld [vmem:[#allocation2] sm:$0xff]
        %v531 = vld [vmem:[#allocation2 + $0x8] sm:$0xff]
        %v532 = vld [vmem:[%s246] sm:$0xff]
        %v533 = vld [vmem:[%s246 + $0x8] sm:$0xff]
        %535 = vset.pattern.permute.xlu0 0
        %536 = vperm.xlu0 %535, %v532
        %v537 = vpop.permute.xlu0 %536
        %540 = vset.pattern.permute.xlu0 0
        %541 = vperm.xlu0 %540, %v533
        %v542 = vpop.permute.xlu0 %541
        %v544 = vadd.f32 %v530, %v537
        %v545 = vadd.f32 %v531, %v542
        %v546 = vmax.f32 %v544, %v545
        %v547 = vrot.slane %v546, 4
        %v548 = vmax.f32 %v546, %v547
        %v549 = vrot.slane %v548, 2
        %v550 = vmax.f32 %v548, %v549
        %v551 = vrot.slane %v550, 1
        %v552 = vmax.f32 %v550, %v551
        %553 = vset.pattern.permute.xlu0 1
        %554 = vperm.xlu0 %553, %v532
        %v555 = vpop.permute.xlu0 %554
        %557 = vset.pattern.permute.xlu0 1
        %558 = vperm.xlu0 %557, %v533
        %v559 = vpop.permute.xlu0 %558
        %v561 = vadd.f32 %v530, %v555
        %v562 = vadd.f32 %v531, %v559
        %v563 = vmax.f32 %v561, %v562
        %v564 = vrot.slane %v563, 4
        %v565 = vmax.f32 %v563, %v564
        %v566 = vrot.slane %v565, 2
        %v567 = vmax.f32 %v565, %v566
        %v568 = vrot.slane %v567, 1
        %v569 = vmax.f32 %v567, %v568
        %570 = vset.pattern.permute.xlu0 2
        %571 = vperm.xlu0 %570, %v532
        %v572 = vpop.permute.xlu0 %571
        %574 = vset.pattern.permute.xlu0 2
        %575 = vperm.xlu0 %574, %v533
        %v576 = vpop.permute.xlu0 %575
        %v578 = vadd.f32 %v530, %v572
        %v579 = vadd.f32 %v531, %v576
        %v580 = vmax.f32 %v578, %v579
        %v581 = vrot.slane %v580, 4
        %v582 = vmax.f32 %v580, %v581
        %v583 = vrot.slane %v582, 2
        %v584 = vmax.f32 %v582, %v583
        %v585 = vrot.slane %v584, 1
        %v586 = vmax.f32 %v584, %v585
        %vm587 = vcmask 1040384
        %v588 = vsel %vm587, %v552, %v569
        %vm589 = vcmask 1041408
        %v590 = vsel %vm589, %v588, %v586
        %v592 = vlaneseq
        %v593 = vshrl.u32 %v592, 7
        %v594 = vsub.s32 0, %v593
        %v595 = vrot.slane %v529, %v594
        %v597 = vadd.f32 %v590, %v595
        %598 = vst [vmem:[%s250] sm:$0x7] %v597
        %p599 = scmp.lt.s32.totalorder %s19, 1
        %s600 = scalar_select %p599, %s19, 1
        %s601 = smul.addr %s600, 4
        %s602 = scalar_lea.vmem %s4, %s601
        // Predicated region
        $region45: #{tpu_custom_call.1} parent=35 // pred_check
          %p603 = pneg %p131
        $region46: #{tpu_custom_call.1} parent=35 // pred_check_branch
          %605 = sbr.rel (%p603) target = $region48
        $region47: #{tpu_custom_call.1} parent=35 // pred_region
          _
        $region48: #{tpu_custom_call.1} parent=35 // pred_fallthru
          _
      $region36: #{tpu_custom_call.1} parent=5 // pred_fallthru
        _
      %p606 = scmp.le.s32.totalorder 2, %s14
      // Predicated region
      $region49: #{tpu_custom_call.1} parent=5 // pred_check
        %p607 = pneg %p606
      $region50: #{tpu_custom_call.1} parent=5 // pred_check_branch
        %609 = sbr.rel (%p607) target = $region52
      $region51: #{tpu_custom_call.1} parent=5 // pred_region
        %s610 = ssub.s32 %s14, 2
        // Predicated region
        $region53: #{tpu_custom_call.1} parent=51 // pred_check
          %p611 = pneg %p137
        $region54: #{tpu_custom_call.1} parent=51 // pred_check_branch
          %613 = sbr.rel (%p611) target = $region56
        $region55: #{tpu_custom_call.1} parent=51 // pred_region
          %p614 = scmp.lt.s32.totalorder %s20, 1
          %s615 = scalar_select %p614, %s20, 1
          %s616 = smul.addr %s615, 4
          %s617 = scalar_lea.vmem %s4, %s616
        $region56: #{tpu_custom_call.1} parent=51 // pred_fallthru
          _
      $region52: #{tpu_custom_call.1} parent=5 // pred_fallthru
        _
    $region6: #{tpu_custom_call.1} parent=1 // loop_footer
      %s18 = sadd.s32 1, %s14
    $region7: #{tpu_custom_call.1} parent=1 // loop_footer_branch
      %13 = sbr.rel target = $region3
    $region8: #{tpu_custom_call.1} parent=1 // loop_exit
      _
    %618 = vsyncpa [#allocation4], 1
    %s619 = scalar_lea.sflag [#allocation4], 1
    %620 = vsyncpa %s619, 1
    %621 = vsyncpa [#allocation6], 1

</llo_original>
